<compile_context>
chip_gen: v7x
topology: tpu7x:2x2x1
jax: 0.10.0
libtpu: 0.0.40
codegen_flags: <defaults>
</compile_context>

<pallas_src>
import functools

import numpy as np
import jax
import jax.numpy as jnp
from jax.experimental import pallas as pl
from jax.experimental.pallas import tpu as pltpu

# TODO(synk): NBAR / NSTAR come from a Fortran namelist file in the original
# code; here they are fixed deterministic constants (typical QLC-ice values).
NBAR = 1.0
NSTAR = 0.9

NUM_HIDDEN_LAYERS = 4      # -> fc_in, post_fc_in, 2 extra hidden layers, fc_out
HIDDEN_SIZE = 32
INPUT_DIM = 2

TWO_PI = 2.0 * np.pi


def _round_up(v, m):
    return ((v + m - 1) // m) * m


def _default_use_bf16():
    """bf16 hidden path only where the VPU/EUP support bf16 (v6e / v7x)."""
    try:
        kind = jax.devices()[0].device_kind.lower()
    except Exception:
        return False
    return ("v6" in kind) or ("v7" in kind)


# ----------------------------------------------------------------------------
# Pallas kernel: full MLP forward + Nqll equilibrium for one batch tile.
# Activations are kept transposed: (features, batch) with batch on lanes.
# ----------------------------------------------------------------------------
def ntot_pinn_kernel(x_ref, *refs, compute_dtype=jnp.float32):
    """refs = (w0, b0, w1, b1, ..., w_stack, b_stack, out_ref).

    Weights are (out_dim, in_dim) float32; biases are (out_dim, 1) float32.
    The last weight/bias pair is the stacked output layer:
        w_stack = [w_out ; 2*pi*w_out]  (2, H),   b_stack = [b_out ; 2*pi*b_out]  (2, 1)
    x_ref is (2, bm); out_ref is (2, bm) = [Ntot_row, NqllEQ_row].
    """
    out_ref = refs[-1]
    wrefs = refs[:-1]
    n_layers = len(wrefs) // 2

    x = x_ref[...]                               # (2, bm) float32

    # fc_in (2 -> H): K=2, so do it as VPU broadcast FMAs (skip the MXU pass).
    w0 = wrefs[0][...]                           # (H, 2) f32
    b0 = wrefs[1][...]                           # (H, 1) f32
    pre = w0[:, 0:1] * x[0:1, :] + w0[:, 1:2] * x[1:2, :] + b0            # (H, bm) f32
    h = jnp.tanh(pre.astype(compute_dtype))                               # (H, bm)

    # post_fc_in + fc_hidden[*]: tanh(W @ H + b) on the MXU, N = bm lane-dense.
    # Matmul inputs in compute_dtype (bf16 on v6e/v7x), accumulation in f32.
    for li in range(1, n_layers - 1):
        w = wrefs[2 * li][...].astype(compute_dtype)                      # (H, H)
        b = wrefs[2 * li + 1][...]                                        # (H, 1) f32
        pre = jnp.dot(w, h, preferred_element_type=jnp.float32) + b       # (H, bm) f32
        h = jnp.tanh(pre.astype(compute_dtype))

    # Stacked output layer: one MXU pass -> row0 = Ntot, row1 = 2*pi*Ntot.
    w_s = wrefs[-2][...].astype(compute_dtype)                            # (2, H)
    b_s = wrefs[-1][...]                                                  # (2, 1) f32
    y = jnp.dot(w_s, h, preferred_element_type=jnp.float32) + b_s         # (2, bm) f32

    ntot = y[0:1, :]                                                      # (1, bm)
    nqll = NBAR - NSTAR * jnp.sin(y[1:2, :])                              # (1, bm)

    # Two direct lane-dense row stores (no concatenate temporary).
    out_ref[0:1, :] = ntot
    out_ref[1:2, :] = nqll


# ----------------------------------------------------------------------------
# Wrapper: parameter setup + pallas_call plumbing.
# ----------------------------------------------------------------------------
def init_params(key, num_hidden_layers=NUM_HIDDEN_LAYERS, hidden=HIDDEN_SIZE):
    """Deterministic synthetic weights. Layer list mirrors the PyTorch module:
       fc_in (2->H), post_fc_in (H->H), (num_hidden_layers-2) x (H->H), fc_out (H->1).
       Weights stored as (out_dim, in_dim); biases as (out_dim, 1)."""
    dims = [(hidden, INPUT_DIM), (hidden, hidden)]
    dims += [(hidden, hidden)] * (num_hidden_layers - 2)
    dims += [(1, hidden)]

    params = []
    for (dout, din) in dims:
        key, kw = jax.random.split(key)
        w = (jax.random.normal(kw, (dout, din), dtype=jnp.float32)
             * (1.0 / np.sqrt(din)))
        b = jnp.zeros((dout, 1), dtype=jnp.float32)
        params.append((w, b))
    return params


def ntot_pinn_forward(x, params, *, bm=8192, use_bf16=None):
    """x: (B, 2) float32 -> (B, 2) float32 = [Ntot, NqllEQ]."""
    B, d = x.shape
    assert d == INPUT_DIM

    if use_bf16 is None:
        use_bf16 = _default_use_bf16()
    compute_dtype = jnp.bfloat16 if use_bf16 else jnp.float32

    # Lane-aligned batch tile (256-multiple for MXU/lane fill). Capped at
    # round_up(cdiv(B, 2), 256) so the grid has >= 2 steps whenever possible:
    # on v7x both TensorCores then pick up "parallel" grid steps, and large
    # tiles don't turn into mostly-padding tail tiles for awkward B.
    bm_eff = min(_round_up(bm, 256), _round_up(pl.cdiv(B, 2), 256))
    B_pad = _round_up(B, bm_eff)
    n_steps = B_pad // bm_eff

    # Transpose to batch-on-lanes layout: (2, B_pad). Padded columns run
    # through the net with x = 0 and are sliced off afterwards.
    x_t = jnp.pad(x, ((0, B_pad - B), (0, 0))).T.astype(jnp.float32)

    # Flatten params; fold the 2*pi sin-argument scale into a stacked output
    # layer [w_out ; 2*pi*w_out] so one MXU pass yields both rows.
    flat = []
    for (w, b) in params[:-1]:
        flat.append(w.astype(jnp.float32))
        flat.append(b.reshape(-1, 1).astype(jnp.float32))
    w_out, b_out = params[-1]
    w_out = w_out.astype(jnp.float32).reshape(1, -1)
    b_out = b_out.astype(jnp.float32).reshape(1, 1)
    flat.append(jnp.concatenate([w_out, TWO_PI * w_out], axis=0))   # (2, H)
    flat.append(jnp.concatenate([b_out, TWO_PI * b_out], axis=0))   # (2, 1)

    def full_block_spec(arr):
        # Whole (small) parameter array resident in VMEM for every grid step.
        nd = arr.ndim
        return pl.BlockSpec(arr.shape, lambda i, _nd=nd: (0,) * _nd)

    in_specs = [pl.BlockSpec((INPUT_DIM, bm_eff), lambda i: (0, i))]
    in_specs += [full_block_spec(a) for a in flat]
    out_spec = pl.BlockSpec((2, bm_eff), lambda i: (0, i))

    # Advisory cost estimate so XLA can schedule the pad/transpose around the
    # kernel: per element ~ fc_in + 3 HxH matmuls + stacked out, 4H tanh + 1 sin.
    H = HIDDEN_SIZE
    n_hidden_mm = NUM_HIDDEN_LAYERS - 1
    param_bytes = int(sum(int(np.prod(a.shape)) for a in flat) * 4)
    cost = pl.CostEstimate(
        flops=int(B_pad) * (2 * INPUT_DIM * H + n_hidden_mm * 2 * H * H + 2 * 2 * H),
        transcendentals=int(B_pad) * (NUM_HIDDEN_LAYERS * H + 1),
        bytes_accessed=int(B_pad) * 4 * (INPUT_DIM + 2) + param_bytes,
    )

    kernel = functools.partial(ntot_pinn_kernel, compute_dtype=compute_dtype)

    out_t = pl.pallas_call(
        kernel,
        out_shape=jax.ShapeDtypeStruct((2, B_pad), jnp.float32),
        grid_spec=pl.GridSpec(
            grid=(n_steps,),
            in_specs=in_specs,
            out_specs=out_spec,
        ),
        compiler_params=pltpu.CompilerParams(
            dimension_semantics=("parallel",),
        ),
        cost_estimate=cost,
    )(x_t, *flat)

    # Back to (B, 2) row-major like the PyTorch module.
    return out_t.T[:B]


# ----------------------------------------------------------------------------
# Pure-JAX reference (for correctness check only).
# ----------------------------------------------------------------------------
def ntot_pinn_reference(x, params):
    h = x                                          # (B, 2)
    for (w, b) in params[:-1]:
        h = jnp.tanh(h @ w.T + b[:, 0])
    w_out, b_out = params[-1]
    ntot = h @ w_out.T + b_out[:, 0]               # (B, 1)
    nqll = NBAR - NSTAR * jnp.sin(2.0 * np.pi * ntot)
    return jnp.concatenate([ntot, nqll], axis=1)


if __name__ == "__main__":
    key = jax.random.PRNGKey(0)
    key, kx = jax.random.split(key)

    B = 16
    x = jax.random.normal(kx, (B, INPUT_DIM), dtype=jnp.float32)
    params = init_params(key)

    ref = ntot_pinn_reference(x, params)

    # 1) Pure-f32 path: validated tightly against the f32 reference.
    out_f32 = jax.block_until_ready(ntot_pinn_forward(x, params, use_bf16=False))
    assert out_f32.shape == (B, 2)
    np.testing.assert_allclose(np.asarray(out_f32), np.asarray(ref),
                               rtol=1e-5, atol=1e-5)

    # 2) Default (device-dependent) path: bf16 hidden layers on v6e/v7x, f32 on
    #    v5e. bf16 rounding through 4 tanh layers + the 2*pi*sin amplification
    #    warrants a loose sanity tolerance only (precision is covered by (1)).
    out = jax.block_until_ready(ntot_pinn_forward(x, params))
    assert out.shape == (B, 2)
    np.testing.assert_allclose(np.asarray(out), np.asarray(ref),
                               rtol=5e-2, atol=2e-1)

    print("KERNEL_OK")
</pallas_src>

<mosaic_0001>
module attributes {stable_mosaic.version = 11 : i64} {
  func.func @ntot_pinn_kernel(%arg0: i32, %arg1: memref<2x256xf32, #tpu.memory_space<vmem>>, %arg2: memref<32x2xf32, #tpu.memory_space<vmem>>, %arg3: memref<32x1xf32, #tpu.memory_space<vmem>>, %arg4: memref<32x32xf32, #tpu.memory_space<vmem>>, %arg5: memref<32x1xf32, #tpu.memory_space<vmem>>, %arg6: memref<32x32xf32, #tpu.memory_space<vmem>>, %arg7: memref<32x1xf32, #tpu.memory_space<vmem>>, %arg8: memref<32x32xf32, #tpu.memory_space<vmem>>, %arg9: memref<32x1xf32, #tpu.memory_space<vmem>>, %arg10: memref<2x32xf32, #tpu.memory_space<vmem>>, %arg11: memref<2x1xf32, #tpu.memory_space<vmem>>, %arg12: memref<2x256xf32, #tpu.memory_space<vmem>>) attributes {dimension_semantics = [#tpu.dimension_semantics<parallel>], iteration_bounds = array<i64: 1>, scalar_prefetch = 0 : i64, scratch_operands = 0 : i64, tpu.core_type = #tpu.core_type<tc>, window_params = [{transform_indices = @transform_0, window_bounds = array<i64: 2, 256>}, {pipeline_mode = #tpu.pipeline_mode<synchronous>, transform_indices = @transform_1, window_bounds = array<i64: 32, 2>}, {pipeline_mode = #tpu.pipeline_mode<synchronous>, transform_indices = @transform_2, window_bounds = array<i64: 32, 1>}, {pipeline_mode = #tpu.pipeline_mode<synchronous>, transform_indices = @transform_3, window_bounds = array<i64: 32, 32>}, {pipeline_mode = #tpu.pipeline_mode<synchronous>, transform_indices = @transform_4, window_bounds = array<i64: 32, 1>}, {pipeline_mode = #tpu.pipeline_mode<synchronous>, transform_indices = @transform_5, window_bounds = array<i64: 32, 32>}, {pipeline_mode = #tpu.pipeline_mode<synchronous>, transform_indices = @transform_6, window_bounds = array<i64: 32, 1>}, {pipeline_mode = #tpu.pipeline_mode<synchronous>, transform_indices = @transform_7, window_bounds = array<i64: 32, 32>}, {pipeline_mode = #tpu.pipeline_mode<synchronous>, transform_indices = @transform_8, window_bounds = array<i64: 32, 1>}, {pipeline_mode = #tpu.pipeline_mode<synchronous>, transform_indices = @transform_9, window_bounds = array<i64: 2, 32>}, {pipeline_mode = #tpu.pipeline_mode<synchronous>, transform_indices = @transform_10, window_bounds = array<i64: 2, 1>}, {transform_indices = @transform_11, window_bounds = array<i64: 2, 256>}]} {
    %c0 = arith.constant 0 : index
    %c0_0 = arith.constant 0 : index
    %0 = vector.load %arg1[%c0, %c0_0] : memref<2x256xf32, #tpu.memory_space<vmem>>, vector<2x256xf32>
    %c0_1 = arith.constant 0 : index
    %c0_2 = arith.constant 0 : index
    %1 = vector.load %arg2[%c0_1, %c0_2] : memref<32x2xf32, #tpu.memory_space<vmem>>, vector<32x2xf32>
    %c0_3 = arith.constant 0 : index
    %c0_4 = arith.constant 0 : index
    %2 = vector.load %arg3[%c0_3, %c0_4] : memref<32x1xf32, #tpu.memory_space<vmem>>, vector<32x1xf32>
    %3 = vector.extract_strided_slice %1 {offsets = [0, 0], sizes = [32, 1], strides = [1, 1]} : vector<32x2xf32> to vector<32x1xf32>
    %4 = vector.extract_strided_slice %0 {offsets = [0, 0], sizes = [1, 256], strides = [1, 1]} : vector<2x256xf32> to vector<1x256xf32>
    %5 = vector.broadcast %3 : vector<32x1xf32> to vector<32x256xf32>
    %6 = vector.broadcast %4 : vector<1x256xf32> to vector<32x256xf32>
    %7 = arith.mulf %5, %6 : vector<32x256xf32>
    %8 = vector.extract_strided_slice %1 {offsets = [0, 1], sizes = [32, 1], strides = [1, 1]} : vector<32x2xf32> to vector<32x1xf32>
    %9 = vector.extract_strided_slice %0 {offsets = [1, 0], sizes = [1, 256], strides = [1, 1]} : vector<2x256xf32> to vector<1x256xf32>
    %10 = vector.broadcast %8 : vector<32x1xf32> to vector<32x256xf32>
    %11 = vector.broadcast %9 : vector<1x256xf32> to vector<32x256xf32>
    %12 = arith.mulf %10, %11 : vector<32x256xf32>
    %13 = arith.addf %7, %12 : vector<32x256xf32>
    %14 = vector.broadcast %2 : vector<32x1xf32> to vector<32x256xf32>
    %15 = arith.addf %13, %14 : vector<32x256xf32>
    %16 = math.tanh %15 : vector<32x256xf32>
    %c0_5 = arith.constant 0 : index
    %c0_6 = arith.constant 0 : index
    %17 = vector.load %arg4[%c0_5, %c0_6] : memref<32x32xf32, #tpu.memory_space<vmem>>, vector<32x32xf32>
    %c0_7 = arith.constant 0 : index
    %c0_8 = arith.constant 0 : index
    %18 = vector.load %arg5[%c0_7, %c0_8] : memref<32x1xf32, #tpu.memory_space<vmem>>, vector<32x1xf32>
    %cst = arith.constant dense<0.000000e+00> : vector<32x256xf32>
    %19 = tpu.matmul %17, %16, %cst {dimension_numbers = #tpu.dot_dimension_numbers<[1], [0], [0], [1], [0, 0, 1, 1], [], []>} : vector<32x32xf32>, vector<32x256xf32>, vector<32x256xf32> -> vector<32x256xf32>
    %20 = vector.broadcast %18 : vector<32x1xf32> to vector<32x256xf32>
    %21 = arith.addf %19, %20 : vector<32x256xf32>
    %22 = math.tanh %21 : vector<32x256xf32>
    %c0_9 = arith.constant 0 : index
    %c0_10 = arith.constant 0 : index
    %23 = vector.load %arg6[%c0_9, %c0_10] : memref<32x32xf32, #tpu.memory_space<vmem>>, vector<32x32xf32>
    %c0_11 = arith.constant 0 : index
    %c0_12 = arith.constant 0 : index
    %24 = vector.load %arg7[%c0_11, %c0_12] : memref<32x1xf32, #tpu.memory_space<vmem>>, vector<32x1xf32>
    %cst_13 = arith.constant dense<0.000000e+00> : vector<32x256xf32>
    %25 = tpu.matmul %23, %22, %cst_13 {dimension_numbers = #tpu.dot_dimension_numbers<[1], [0], [0], [1], [0, 0, 1, 1], [], []>} : vector<32x32xf32>, vector<32x256xf32>, vector<32x256xf32> -> vector<32x256xf32>
    %26 = vector.broadcast %24 : vector<32x1xf32> to vector<32x256xf32>
    %27 = arith.addf %25, %26 : vector<32x256xf32>
    %28 = math.tanh %27 : vector<32x256xf32>
    %c0_14 = arith.constant 0 : index
    %c0_15 = arith.constant 0 : index
    %29 = vector.load %arg8[%c0_14, %c0_15] : memref<32x32xf32, #tpu.memory_space<vmem>>, vector<32x32xf32>
    %c0_16 = arith.constant 0 : index
    %c0_17 = arith.constant 0 : index
    %30 = vector.load %arg9[%c0_16, %c0_17] : memref<32x1xf32, #tpu.memory_space<vmem>>, vector<32x1xf32>
    %cst_18 = arith.constant dense<0.000000e+00> : vector<32x256xf32>
    %31 = tpu.matmul %29, %28, %cst_18 {dimension_numbers = #tpu.dot_dimension_numbers<[1], [0], [0], [1], [0, 0, 1, 1], [], []>} : vector<32x32xf32>, vector<32x256xf32>, vector<32x256xf32> -> vector<32x256xf32>
    %32 = vector.broadcast %30 : vector<32x1xf32> to vector<32x256xf32>
    %33 = arith.addf %31, %32 : vector<32x256xf32>
    %34 = math.tanh %33 : vector<32x256xf32>
    %c0_19 = arith.constant 0 : index
    %c0_20 = arith.constant 0 : index
    %35 = vector.load %arg10[%c0_19, %c0_20] : memref<2x32xf32, #tpu.memory_space<vmem>>, vector<2x32xf32>
    %c0_21 = arith.constant 0 : index
    %c0_22 = arith.constant 0 : index
    %36 = vector.load %arg11[%c0_21, %c0_22] : memref<2x1xf32, #tpu.memory_space<vmem>>, vector<2x1xf32>
    %cst_23 = arith.constant dense<0.000000e+00> : vector<2x256xf32>
    %37 = tpu.matmul %35, %34, %cst_23 {dimension_numbers = #tpu.dot_dimension_numbers<[1], [0], [0], [1], [0, 0, 1, 1], [], []>} : vector<2x32xf32>, vector<32x256xf32>, vector<2x256xf32> -> vector<2x256xf32>
    %38 = vector.broadcast %36 : vector<2x1xf32> to vector<2x256xf32>
    %39 = arith.addf %37, %38 : vector<2x256xf32>
    %40 = vector.extract_strided_slice %39 {offsets = [0, 0], sizes = [1, 256], strides = [1, 1]} : vector<2x256xf32> to vector<1x256xf32>
    %41 = vector.extract_strided_slice %39 {offsets = [1, 0], sizes = [1, 256], strides = [1, 1]} : vector<2x256xf32> to vector<1x256xf32>
    %42 = math.sin %41 : vector<1x256xf32>
    %cst_24 = arith.constant 0.899999976 : f32
    %43 = vector.broadcast %cst_24 : f32 to vector<1x256xf32>
    %44 = arith.mulf %43, %42 : vector<1x256xf32>
    %cst_25 = arith.constant 1.000000e+00 : f32
    %45 = vector.broadcast %cst_25 : f32 to vector<1x256xf32>
    %46 = arith.subf %45, %44 : vector<1x256xf32>
    %c0_26 = arith.constant 0 : index
    %c0_27 = arith.constant 0 : index
    %47 = vector.load %arg12[%c0_26, %c0_27] : memref<2x256xf32, #tpu.memory_space<vmem>>, vector<1x256xf32>
    tpu.vector_store %arg12[%c0_26, %c0_27], %40 {strides = array<i32>} : memref<2x256xf32, #tpu.memory_space<vmem>>, vector<1x256xf32>,
    %c1 = arith.constant 1 : index
    %c0_28 = arith.constant 0 : index
    %48 = vector.load %arg12[%c1, %c0_28] : memref<2x256xf32, #tpu.memory_space<vmem>>, vector<1x256xf32>
    tpu.vector_store %arg12[%c1, %c0_28], %46 {strides = array<i32>} : memref<2x256xf32, #tpu.memory_space<vmem>>, vector<1x256xf32>,
    return
  }
  func.func @transform_0(%arg0: i32) -> (i32, i32) {
    %c0_i32 = arith.constant 0 : i32
    %c0_i32_0 = arith.constant 0 : i32
    return %c0_i32, %arg0 : i32, i32
  }
  func.func @transform_1(%arg0: i32) -> (i32, i32) {
    %c0_i32 = arith.constant 0 : i32
    %c0_i32_0 = arith.constant 0 : i32
    %c0_i32_1 = arith.constant 0 : i32
    return %c0_i32, %c0_i32_0 : i32, i32
  }
  func.func @transform_2(%arg0: i32) -> (i32, i32) {
    %c0_i32 = arith.constant 0 : i32
    %c0_i32_0 = arith.constant 0 : i32
    %c0_i32_1 = arith.constant 0 : i32
    return %c0_i32, %c0_i32_0 : i32, i32
  }
  func.func @transform_3(%arg0: i32) -> (i32, i32) {
    %c0_i32 = arith.constant 0 : i32
    %c0_i32_0 = arith.constant 0 : i32
    %c0_i32_1 = arith.constant 0 : i32
    return %c0_i32, %c0_i32_0 : i32, i32
  }
  func.func @transform_4(%arg0: i32) -> (i32, i32) {
    %c0_i32 = arith.constant 0 : i32
    %c0_i32_0 = arith.constant 0 : i32
    %c0_i32_1 = arith.constant 0 : i32
    return %c0_i32, %c0_i32_0 : i32, i32
  }
  func.func @transform_5(%arg0: i32) -> (i32, i32) {
    %c0_i32 = arith.constant 0 : i32
    %c0_i32_0 = arith.constant 0 : i32
    %c0_i32_1 = arith.constant 0 : i32
    return %c0_i32, %c0_i32_0 : i32, i32
  }
  func.func @transform_6(%arg0: i32) -> (i32, i32) {
    %c0_i32 = arith.constant 0 : i32
    %c0_i32_0 = arith.constant 0 : i32
    %c0_i32_1 = arith.constant 0 : i32
    return %c0_i32, %c0_i32_0 : i32, i32
  }
  func.func @transform_7(%arg0: i32) -> (i32, i32) {
    %c0_i32 = arith.constant 0 : i32
    %c0_i32_0 = arith.constant 0 : i32
    %c0_i32_1 = arith.constant 0 : i32
    return %c0_i32, %c0_i32_0 : i32, i32
  }
  func.func @transform_8(%arg0: i32) -> (i32, i32) {
    %c0_i32 = arith.constant 0 : i32
    %c0_i32_0 = arith.constant 0 : i32
    %c0_i32_1 = arith.constant 0 : i32
    return %c0_i32, %c0_i32_0 : i32, i32
  }
  func.func @transform_9(%arg0: i32) -> (i32, i32) {
    %c0_i32 = arith.constant 0 : i32
    %c0_i32_0 = arith.constant 0 : i32
    %c0_i32_1 = arith.constant 0 : i32
    return %c0_i32, %c0_i32_0 : i32, i32
  }
  func.func @transform_10(%arg0: i32) -> (i32, i32) {
    %c0_i32 = arith.constant 0 : i32
    %c0_i32_0 = arith.constant 0 : i32
    %c0_i32_1 = arith.constant 0 : i32
    return %c0_i32, %c0_i32_0 : i32, i32
  }
  func.func @transform_11(%arg0: i32) -> (i32, i32) {
    %c0_i32 = arith.constant 0 : i32
    %c0_i32_0 = arith.constant 0 : i32
    return %c0_i32, %arg0 : i32, i32
  }
}

</mosaic_0001>

<llo_original>
// kernel: tpu_custom_call.1
$region0: #{tpu_custom_call.1}
  #allocation0 [shape = 'u32[]', space=smem, size = 0x4, offset = 0x4, fixed_abs, tag = 'smem constant byte address 0x4 - core index']
  #allocation1 [shape = 'u32[144,128]{1,0:T(1,128)}', space=vmem, size = 0x12000, scoped, tag = 'internal scratch']
  %s0 = inlined_call_operand.vmem [shape: f32[2,256], index: 0, kind: input, shape index: {}]
  %s1 = inlined_call_operand.vmem [shape: f32[32,2], index: 1, kind: input, shape index: {}]
  %s2 = inlined_call_operand.vmem [shape: f32[32,1], index: 2, kind: input, shape index: {}]
  %s3 = inlined_call_operand.vmem [shape: f32[32,32], index: 3, kind: input, shape index: {}]
  %s4 = inlined_call_operand.vmem [shape: f32[32,1], index: 4, kind: input, shape index: {}]
  %s5 = inlined_call_operand.vmem [shape: f32[32,32], index: 5, kind: input, shape index: {}]
  %s6 = inlined_call_operand.vmem [shape: f32[32,1], index: 6, kind: input, shape index: {}]
  %s7 = inlined_call_operand.vmem [shape: f32[32,32], index: 7, kind: input, shape index: {}]
  %s8 = inlined_call_operand.vmem [shape: f32[32,1], index: 8, kind: input, shape index: {}]
  %s9 = inlined_call_operand.vmem [shape: f32[2,32], index: 9, kind: input, shape index: {}]
  %s10 = inlined_call_operand.vmem [shape: f32[2,1], index: 10, kind: input, shape index: {}]
  %s11 = inlined_call_operand.hbm [shape: f32[2,256], index: 11, kind: output, shape index: {}]
  %s12 = sld [smem:[#allocation0]]
  $region54: #{tpu_custom_call.1} parent=0
    _
  %s14 = ssub.s32 1, %s12
  %s15 = scalar_select 0, %s14, %s12
  $region1: #{tpu_custom_call.1} parent=0
    #allocation2 [shape = 'u8[2048]{0}', space=vmem, size = 0x800, scoped, tag = 'output window, operand 0, single buffered']
    #allocation3 [shape = 's32[1]{0}', space=sflag, size = 0x4, scoped, tag = 'scoped memory for tpu_custom_call.1']
    %16 = vsyncpa [#allocation3], 0
    // Predicated region
    $region2: #{tpu_custom_call.1} parent=1 // pred_check
      _
    $region3: #{tpu_custom_call.1} parent=1 // pred_check_branch
      %18 = sbr.rel (0) target = $region5
    $region4: #{tpu_custom_call.1} parent=1 // pred_region
      _
    $region5: #{tpu_custom_call.1} parent=1 // pred_fallthru
      _
    // Predicated region
    $region6: #{tpu_custom_call.1} parent=1 // pred_check
      _
    $region7: #{tpu_custom_call.1} parent=1 // pred_check_branch
      %20 = sbr.rel (0) target = $region9
    $region8: #{tpu_custom_call.1} parent=1 // pred_region
      _
    $region9: #{tpu_custom_call.1} parent=1 // pred_fallthru
      _
    // Predicated region
    $region10: #{tpu_custom_call.1} parent=1 // pred_check
      _
    $region11: #{tpu_custom_call.1} parent=1 // pred_check_branch
      %22 = sbr.rel (0) target = $region13
    $region12: #{tpu_custom_call.1} parent=1 // pred_region
      _
    $region13: #{tpu_custom_call.1} parent=1 // pred_fallthru
      _
    // Predicated region
    $region14: #{tpu_custom_call.1} parent=1 // pred_check
      _
    $region15: #{tpu_custom_call.1} parent=1 // pred_check_branch
      %24 = sbr.rel (0) target = $region17
    $region16: #{tpu_custom_call.1} parent=1 // pred_region
      _
    $region17: #{tpu_custom_call.1} parent=1 // pred_fallthru
      _
    // Predicated region
    $region18: #{tpu_custom_call.1} parent=1 // pred_check
      _
    $region19: #{tpu_custom_call.1} parent=1 // pred_check_branch
      %26 = sbr.rel (0) target = $region21
    $region20: #{tpu_custom_call.1} parent=1 // pred_region
      _
    $region21: #{tpu_custom_call.1} parent=1 // pred_fallthru
      _
    // Predicated region
    $region22: #{tpu_custom_call.1} parent=1 // pred_check
      _
    $region23: #{tpu_custom_call.1} parent=1 // pred_check_branch
      %28 = sbr.rel (0) target = $region25
    $region24: #{tpu_custom_call.1} parent=1 // pred_region
      _
    $region25: #{tpu_custom_call.1} parent=1 // pred_fallthru
      _
    // Predicated region
    $region26: #{tpu_custom_call.1} parent=1 // pred_check
      _
    $region27: #{tpu_custom_call.1} parent=1 // pred_check_branch
      %30 = sbr.rel (0) target = $region29
    $region28: #{tpu_custom_call.1} parent=1 // pred_region
      _
    $region29: #{tpu_custom_call.1} parent=1 // pred_fallthru
      _
    // Predicated region
    $region30: #{tpu_custom_call.1} parent=1 // pred_check
      _
    $region31: #{tpu_custom_call.1} parent=1 // pred_check_branch
      %32 = sbr.rel (0) target = $region33
    $region32: #{tpu_custom_call.1} parent=1 // pred_region
      _
    $region33: #{tpu_custom_call.1} parent=1 // pred_fallthru
      _
    // Predicated region
    $region34: #{tpu_custom_call.1} parent=1 // pred_check
      _
    $region35: #{tpu_custom_call.1} parent=1 // pred_check_branch
      %34 = sbr.rel (0) target = $region37
    $region36: #{tpu_custom_call.1} parent=1 // pred_region
      _
    $region37: #{tpu_custom_call.1} parent=1 // pred_fallthru
      _
    // Predicated region
    $region38: #{tpu_custom_call.1} parent=1 // pred_check
      _
    $region39: #{tpu_custom_call.1} parent=1 // pred_check_branch
      %36 = sbr.rel (0) target = $region41
    $region40: #{tpu_custom_call.1} parent=1 // pred_region
      _
    $region41: #{tpu_custom_call.1} parent=1 // pred_fallthru
      _
    // Predicated region
    $region42: #{tpu_custom_call.1} parent=1 // pred_check
      _
    $region43: #{tpu_custom_call.1} parent=1 // pred_check_branch
      %38 = sbr.rel (0) target = $region45
    $region44: #{tpu_custom_call.1} parent=1 // pred_region
      _
    $region45: #{tpu_custom_call.1} parent=1 // pred_fallthru
      _
    %v39 = vld [vmem:[%s0] sm:$0xf]
    %v40 = vld [vmem:[%s1] sm:$0xff]
    %v41 = vld [vmem:[%s1 + $0x8] sm:$0xff]
    %v42 = vld [vmem:[%s1 + $0x10] sm:$0xff]
    %v43 = vld [vmem:[%s1 + $0x18] sm:$0xff]
    %v44 = vld [vmem:[%s2] sm:$0xff]
    %v45 = vld [vmem:[%s2 + $0x8] sm:$0xff]
    %v46 = vld [vmem:[%s2 + $0x10] sm:$0xff]
    %v47 = vld [vmem:[%s2 + $0x18] sm:$0xff]
    %49 = vset.pattern.permute.xlu0 0
    %50 = vperm.xlu0 %49, %v40
    %v51 = vpop.permute.xlu0 %50
    %54 = vset.pattern.permute.xlu0 0
    %55 = vperm.xlu0 %54, %v41
    %v56 = vpop.permute.xlu0 %55
    %59 = vset.pattern.permute.xlu0 0
    %60 = vperm.xlu0 %59, %v42
    %v61 = vpop.permute.xlu0 %60
    %64 = vset.pattern.permute.xlu0 0
    %65 = vperm.xlu0 %64, %v43
    %v66 = vpop.permute.xlu0 %65
    %v69 = vlaneseq
    %v70 = vshrl.u32 %v69, 7
    %v71 = vsub.s32 0, %v70
    %v72 = vrot.slane %v39, %v71
    %v73 = vlaneseq
    %v74 = vshrl.u32 %v73, 7
    %v75 = vsub.s32 2, %v74
    %v76 = vrot.slane %v39, %v75
    %v79 = vlaneseq
    %v80 = vshrl.u32 %v79, 7
    %v81 = vsub.s32 0, %v80
    %v82 = vrot.slane %v72, %v81
    %v83 = vlaneseq
    %v84 = vshrl.u32 %v83, 7
    %v85 = vsub.s32 0, %v84
    %v86 = vrot.slane %v76, %v85
    %v87 = vmul.f32 %v51, %v82
    %v88 = vmul.f32 %v51, %v86
    %v89 = vmul.f32 %v56, %v82
    %v90 = vmul.f32 %v56, %v86
    %v91 = vmul.f32 %v61, %v82
    %v92 = vmul.f32 %v61, %v86
    %v93 = vmul.f32 %v66, %v82
    %v94 = vmul.f32 %v66, %v86
    %95 = vset.pattern.permute.xlu0 1
    %96 = vperm.xlu0 %95, %v40
    %v97 = vpop.permute.xlu0 %96
    %99 = vset.pattern.permute.xlu0 1
    %100 = vperm.xlu0 %99, %v41
    %v101 = vpop.permute.xlu0 %100
    %103 = vset.pattern.permute.xlu0 1
    %104 = vperm.xlu0 %103, %v42
    %v105 = vpop.permute.xlu0 %104
    %107 = vset.pattern.permute.xlu0 1
    %108 = vperm.xlu0 %107, %v43
    %v109 = vpop.permute.xlu0 %108
    %v111 = vlaneseq
    %v112 = vshrl.u32 %v111, 7
    %v113 = vsub.s32 1, %v112
    %v114 = vrot.slane %v39, %v113
    %v115 = vlaneseq
    %v116 = vshrl.u32 %v115, 7
    %v117 = vsub.s32 3, %v116
    %v118 = vrot.slane %v39, %v117
    %v121 = vlaneseq
    %v122 = vshrl.u32 %v121, 7
    %v123 = vsub.s32 1, %v122
    %v124 = vrot.slane %v114, %v123
    %v125 = vlaneseq
    %v126 = vshrl.u32 %v125, 7
    %v127 = vsub.s32 1, %v126
    %v128 = vrot.slane %v118, %v127
    %v129 = vmul.f32 %v97, %v124
    %v130 = vmul.f32 %v97, %v128
    %v131 = vmul.f32 %v101, %v124
    %v132 = vmul.f32 %v101, %v128
    %v133 = vmul.f32 %v105, %v124
    %v134 = vmul.f32 %v105, %v128
    %v135 = vmul.f32 %v109, %v124
    %v136 = vmul.f32 %v109, %v128
    %v137 = vadd.f32 %v87, %v129
    %v138 = vadd.f32 %v88, %v130
    %v139 = vadd.f32 %v89, %v131
    %v140 = vadd.f32 %v90, %v132
    %v141 = vadd.f32 %v91, %v133
    %v142 = vadd.f32 %v92, %v134
    %v143 = vadd.f32 %v93, %v135
    %v144 = vadd.f32 %v94, %v136
    %146 = vset.pattern.permute.xlu0 0
    %147 = vperm.xlu0 %146, %v44
    %v148 = vpop.permute.xlu0 %147
    %151 = vset.pattern.permute.xlu0 0
    %152 = vperm.xlu0 %151, %v45
    %v153 = vpop.permute.xlu0 %152
    %156 = vset.pattern.permute.xlu0 0
    %157 = vperm.xlu0 %156, %v46
    %v158 = vpop.permute.xlu0 %157
    %161 = vset.pattern.permute.xlu0 0
    %162 = vperm.xlu0 %161, %v47
    %v163 = vpop.permute.xlu0 %162
    %v165 = vadd.f32 %v137, %v148
    %v166 = vadd.f32 %v138, %v148
    %v167 = vadd.f32 %v139, %v153
    %v168 = vadd.f32 %v140, %v153
    %v169 = vadd.f32 %v141, %v158
    %v170 = vadd.f32 %v142, %v158
    %v171 = vadd.f32 %v143, %v163
    %v172 = vadd.f32 %v144, %v163
    %v173 = vtanh.pop %v165
    %v174 = vtanh.pop %v166
    %v175 = vtanh.pop %v167
    %v176 = vtanh.pop %v168
    %v177 = vtanh.pop %v169
    %v178 = vtanh.pop %v170
    %v179 = vtanh.pop %v171
    %v180 = vtanh.pop %v172
    %v181 = vld [vmem:[%s3] sm:$0xff]
    %v182 = vld [vmem:[%s3 + $0x8] sm:$0xff]
    %v183 = vld [vmem:[%s3 + $0x10] sm:$0xff]
    %v184 = vld [vmem:[%s3 + $0x18] sm:$0xff]
    %v185 = vld [vmem:[%s4] sm:$0xff]
    %v186 = vld [vmem:[%s4 + $0x8] sm:$0xff]
    %v187 = vld [vmem:[%s4 + $0x10] sm:$0xff]
    %v188 = vld [vmem:[%s4 + $0x18] sm:$0xff]
    %190 = vset.pattern.permute.xlu0 0
    %191 = vperm.xlu0 %190, %v185
    %v192 = vpop.permute.xlu0 %191
    %195 = vset.pattern.permute.xlu0 0
    %196 = vperm.xlu0 %195, %v186
    %v197 = vpop.permute.xlu0 %196
    %200 = vset.pattern.permute.xlu0 0
    %201 = vperm.xlu0 %200, %v187
    %v202 = vpop.permute.xlu0 %201
    %205 = vset.pattern.permute.xlu0 0
    %206 = vperm.xlu0 %205, %v188
    %v207 = vpop.permute.xlu0 %206
    %vm209 = vcmask 261120
    %v211 = vsel %vm209, %v181, 0
    %v214 = vsel %vm209, %v182, 0
    %v217 = vsel %vm209, %v183, 0
    %v220 = vsel %vm209, %v184, 0
    %222 = vmatprep.subr.mxu0 %v174
    %223 = vmatpush1.msra.mxu0 %v173
    %224 = vmatprep.subr.mxu0 %v176
    %225 = vmatpush1.msra.mxu0 %v175
    %226 = vmatprep.subr.mxu0 %v178
    %227 = vmatpush1.msra.mxu0 %v177
    %228 = vmatprep.subr.mxu0 %v180
    %229 = vmatpush1.msra.mxu0 %v179
    %230 = vmatprep.subr.mxu0 0.0
    %231 = vmatpush1.msra.mxu0 0.0
    %232 = vmatprep.subr.mxu0 0.0
    %233 = vmatpush1.msra.mxu0 0.0
    %234 = vmatprep.subr.mxu0 0.0
    %235 = vmatpush1.msra.mxu0 0.0
    %236 = vmatprep.subr.mxu0 0.0
    %237 = vmatpush1.msra.mxu0 0.0
    %238 = vmatprep.subr.mxu0 0.0
    %239 = vmatpush1.msra.mxu0 0.0
    %240 = vmatprep.subr.mxu0 0.0
    %241 = vmatpush1.msra.mxu0 0.0
    %242 = vmatprep.subr.mxu0 0.0
    %243 = vmatpush1.msra.mxu0 0.0
    %244 = vmatprep.subr.mxu0 0.0
    %245 = vmatpush1.msra.mxu0 0.0
    %246 = vmatprep.subr.mxu0 0.0
    %247 = vmatpush1.msra.mxu0 0.0
    %248 = vmatprep.subr.mxu0 0.0
    %249 = vmatpush1.msra.mxu0 0.0
    %250 = vmatprep.subr.mxu0 0.0
    %251 = vmatpush1.msra.mxu0 0.0
    %252 = vmatprep.subr.mxu0 0.0
    %253 = vmatpush1.msra.mxu0 0.0
    %254 = vmatprep.subr.mxu0 0.0
    %255 = vmatpush1.msra.mxu0 0.0
    %256 = vmatprep.subr.mxu0 0.0
    %257 = vmatpush1.msra.mxu0 0.0
    %258 = vmatprep.subr.mxu0 0.0
    %259 = vmatpush1.msra.mxu0 0.0
    %260 = vmatprep.subr.mxu0 0.0
    %261 = vmatpush1.msra.mxu0 0.0
    %262 = vmatprep.subr.mxu0 0.0
    %263 = vmatpush1.msra.mxu0 0.0
    %264 = vmatprep.subr.mxu0 0.0
    %265 = vmatpush1.msra.mxu0 0.0
    %266 = vmatprep.subr.mxu0 0.0
    %267 = vmatpush1.msra.mxu0 0.0
    %268 = vmatprep.subr.mxu0 0.0
    %269 = vmatpush1.msra.mxu0 0.0
    %270 = vmatprep.subr.mxu0 0.0
    %271 = vmatpush1.msra.mxu0 0.0
    %272 = vmatprep.subr.mxu0 0.0
    %273 = vmatpush1.msra.mxu0 0.0
    %274 = vmatprep.subr.mxu0 0.0
    %275 = vmatpush1.msra.mxu0 0.0
    %276 = vmatprep.subr.mxu0 0.0
    %277 = vmatpush1.msra.mxu0 0.0
    %278 = vmatprep.subr.mxu0 0.0
    %279 = vmatpush1.msra.mxu0 0.0
    %280 = vmatprep.subr.mxu0 0.0
    %281 = vmatpush1.msra.mxu0 0.0
    %282 = vmatprep.subr.mxu0 0.0
    %283 = vmatpush1.msra.mxu0 0.0
    %284 = vmatprep.subr.mxu0 0.0
    %285 = vmatpush1.msra.mxu0 0.0
    %286 = vmatprep.mubr.f32.mxu0 0.0
    %287 = vmatmul.mubr.f32.gmra.mrb[0].mxu0 %v211
    %v288 = vpop.f32.mrb[0].mxu0
    %v289 = vadd.f32 %v192, %v288
    %v290 = vpop.f32.mrb[0].mxu0
    %v291 = vadd.f32 %v192, %v290
    %292 = vmatprep.mubr.f32.mxu0 0.0
    %293 = vmatmul.mubr.f32.gmra.mrb[0].mxu0 %v214
    %v294 = vpop.f32.mrb[0].mxu0
    %v295 = vadd.f32 %v197, %v294
    %v296 = vpop.f32.mrb[0].mxu0
    %v297 = vadd.f32 %v197, %v296
    %298 = vmatprep.mubr.f32.mxu0 0.0
    %299 = vmatmul.mubr.f32.gmra.mrb[0].mxu0 %v217
    %v300 = vpop.f32.mrb[0].mxu0
    %v301 = vadd.f32 %v202, %v300
    %v302 = vpop.f32.mrb[0].mxu0
    %v303 = vadd.f32 %v202, %v302
    %304 = vmatprep.mubr.f32.mxu0 0.0
    %305 = vmatmul.mubr.f32.gmra.mrb[0].mxu0 %v220
    %v306 = vpop.f32.mrb[0].mxu0
    %v307 = vadd.f32 %v207, %v306
    %v308 = vpop.f32.mrb[0].mxu0
    %v309 = vadd.f32 %v207, %v308
    %310 = vdwg.mxu0
    %v311 = vtanh.pop %v289
    %v312 = vtanh.pop %v291
    %v313 = vtanh.pop %v295
    %v314 = vtanh.pop %v297
    %v315 = vtanh.pop %v301
    %v316 = vtanh.pop %v303
    %v317 = vtanh.pop %v307
    %v318 = vtanh.pop %v309
    %v319 = vld [vmem:[%s5] sm:$0xff]
    %v320 = vld [vmem:[%s5 + $0x8] sm:$0xff]
    %v321 = vld [vmem:[%s5 + $0x10] sm:$0xff]
    %v322 = vld [vmem:[%s5 + $0x18] sm:$0xff]
    %v323 = vld [vmem:[%s6] sm:$0xff]
    %v324 = vld [vmem:[%s6 + $0x8] sm:$0xff]
    %v325 = vld [vmem:[%s6 + $0x10] sm:$0xff]
    %v326 = vld [vmem:[%s6 + $0x18] sm:$0xff]
    %328 = vset.pattern.permute.xlu0 0
    %329 = vperm.xlu0 %328, %v323
    %v330 = vpop.permute.xlu0 %329
    %333 = vset.pattern.permute.xlu0 0
    %334 = vperm.xlu0 %333, %v324
    %v335 = vpop.permute.xlu0 %334
    %338 = vset.pattern.permute.xlu0 0
    %339 = vperm.xlu0 %338, %v325
    %v340 = vpop.permute.xlu0 %339
    %343 = vset.pattern.permute.xlu0 0
    %344 = vperm.xlu0 %343, %v326
    %v345 = vpop.permute.xlu0 %344
    %v348 = vsel %vm209, %v319, 0
    %v351 = vsel %vm209, %v320, 0
    %v354 = vsel %vm209, %v321, 0
    %v357 = vsel %vm209, %v322, 0
    %359 = vmatprep.subr.mxu0 %v312
    %360 = vmatpush1.msra.mxu0 %v311
    %361 = vmatprep.subr.mxu0 %v314
    %362 = vmatpush1.msra.mxu0 %v313
    %363 = vmatprep.subr.mxu0 %v316
    %364 = vmatpush1.msra.mxu0 %v315
    %365 = vmatprep.subr.mxu0 %v318
    %366 = vmatpush1.msra.mxu0 %v317
    %367 = vmatprep.subr.mxu0 0.0
    %368 = vmatpush1.msra.mxu0 0.0
    %369 = vmatprep.subr.mxu0 0.0
    %370 = vmatpush1.msra.mxu0 0.0
    %371 = vmatprep.subr.mxu0 0.0
    %372 = vmatpush1.msra.mxu0 0.0
    %373 = vmatprep.subr.mxu0 0.0
    %374 = vmatpush1.msra.mxu0 0.0
    %375 = vmatprep.subr.mxu0 0.0
    %376 = vmatpush1.msra.mxu0 0.0
    %377 = vmatprep.subr.mxu0 0.0
    %378 = vmatpush1.msra.mxu0 0.0
    %379 = vmatprep.subr.mxu0 0.0
    %380 = vmatpush1.msra.mxu0 0.0
    %381 = vmatprep.subr.mxu0 0.0
    %382 = vmatpush1.msra.mxu0 0.0
    %383 = vmatprep.subr.mxu0 0.0
    %384 = vmatpush1.msra.mxu0 0.0
    %385 = vmatprep.subr.mxu0 0.0
    %386 = vmatpush1.msra.mxu0 0.0
    %387 = vmatprep.subr.mxu0 0.0
    %388 = vmatpush1.msra.mxu0 0.0
    %389 = vmatprep.subr.mxu0 0.0
    %390 = vmatpush1.msra.mxu0 0.0
    %391 = vmatprep.subr.mxu0 0.0
    %392 = vmatpush1.msra.mxu0 0.0
    %393 = vmatprep.subr.mxu0 0.0
    %394 = vmatpush1.msra.mxu0 0.0
    %395 = vmatprep.subr.mxu0 0.0
    %396 = vmatpush1.msra.mxu0 0.0
    %397 = vmatprep.subr.mxu0 0.0
    %398 = vmatpush1.msra.mxu0 0.0
    %399 = vmatprep.subr.mxu0 0.0
    %400 = vmatpush1.msra.mxu0 0.0
    %401 = vmatprep.subr.mxu0 0.0
    %402 = vmatpush1.msra.mxu0 0.0
    %403 = vmatprep.subr.mxu0 0.0
    %404 = vmatpush1.msra.mxu0 0.0
    %405 = vmatprep.subr.mxu0 0.0
    %406 = vmatpush1.msra.mxu0 0.0
    %407 = vmatprep.subr.mxu0 0.0
    %408 = vmatpush1.msra.mxu0 0.0
    %409 = vmatprep.subr.mxu0 0.0
    %410 = vmatpush1.msra.mxu0 0.0
    %411 = vmatprep.subr.mxu0 0.0
    %412 = vmatpush1.msra.mxu0 0.0
    %413 = vmatprep.subr.mxu0 0.0
    %414 = vmatpush1.msra.mxu0 0.0
    %415 = vmatprep.subr.mxu0 0.0
    %416 = vmatpush1.msra.mxu0 0.0
    %417 = vmatprep.subr.mxu0 0.0
    %418 = vmatpush1.msra.mxu0 0.0
    %419 = vmatprep.subr.mxu0 0.0
    %420 = vmatpush1.msra.mxu0 0.0
    %421 = vmatprep.subr.mxu0 0.0
    %422 = vmatpush1.msra.mxu0 0.0
    %423 = vmatprep.mubr.f32.mxu0 0.0
    %424 = vmatmul.mubr.f32.gmra.mrb[0].mxu0 %v348
    %v425 = vpop.f32.mrb[0].mxu0
    %v426 = vadd.f32 %v330, %v425
    %v427 = vpop.f32.mrb[0].mxu0
    %v428 = vadd.f32 %v330, %v427
    %429 = vmatprep.mubr.f32.mxu0 0.0
    %430 = vmatmul.mubr.f32.gmra.mrb[0].mxu0 %v351
    %v431 = vpop.f32.mrb[0].mxu0
    %v432 = vadd.f32 %v335, %v431
    %v433 = vpop.f32.mrb[0].mxu0
    %v434 = vadd.f32 %v335, %v433
    %435 = vmatprep.mubr.f32.mxu0 0.0
    %436 = vmatmul.mubr.f32.gmra.mrb[0].mxu0 %v354
    %v437 = vpop.f32.mrb[0].mxu0
    %v438 = vadd.f32 %v340, %v437
    %v439 = vpop.f32.mrb[0].mxu0
    %v440 = vadd.f32 %v340, %v439
    %441 = vmatprep.mubr.f32.mxu0 0.0
    %442 = vmatmul.mubr.f32.gmra.mrb[0].mxu0 %v357
    %v443 = vpop.f32.mrb[0].mxu0
    %v444 = vadd.f32 %v345, %v443
    %v445 = vpop.f32.mrb[0].mxu0
    %v446 = vadd.f32 %v345, %v445
    %447 = vdwg.mxu0
    %v448 = vtanh.pop %v426
    %v449 = vtanh.pop %v428
    %v450 = vtanh.pop %v432
    %v451 = vtanh.pop %v434
    %v452 = vtanh.pop %v438
    %v453 = vtanh.pop %v440
    %v454 = vtanh.pop %v444
    %v455 = vtanh.pop %v446
    %v456 = vld [vmem:[%s7] sm:$0xff]
    %v457 = vld [vmem:[%s7 + $0x8] sm:$0xff]
    %v458 = vld [vmem:[%s7 + $0x10] sm:$0xff]
    %v459 = vld [vmem:[%s7 + $0x18] sm:$0xff]
    %v460 = vld [vmem:[%s8] sm:$0xff]
    %v461 = vld [vmem:[%s8 + $0x8] sm:$0xff]
    %v462 = vld [vmem:[%s8 + $0x10] sm:$0xff]
    %v463 = vld [vmem:[%s8 + $0x18] sm:$0xff]
    %465 = vset.pattern.permute.xlu0 0
    %466 = vperm.xlu0 %465, %v460
    %v467 = vpop.permute.xlu0 %466
    %470 = vset.pattern.permute.xlu0 0
    %471 = vperm.xlu0 %470, %v461
    %v472 = vpop.permute.xlu0 %471
    %475 = vset.pattern.permute.xlu0 0
    %476 = vperm.xlu0 %475, %v462
    %v477 = vpop.permute.xlu0 %476
    %480 = vset.pattern.permute.xlu0 0
    %481 = vperm.xlu0 %480, %v463
    %v482 = vpop.permute.xlu0 %481
    %v485 = vsel %vm209, %v456, 0
    %v488 = vsel %vm209, %v457, 0
    %v491 = vsel %vm209, %v458, 0
    %v494 = vsel %vm209, %v459, 0
    %496 = vmatprep.subr.mxu0 %v449
    %497 = vmatpush1.msra.mxu0 %v448
    %498 = vmatprep.subr.mxu0 %v451
    %499 = vmatpush1.msra.mxu0 %v450
    %500 = vmatprep.subr.mxu0 %v453
    %501 = vmatpush1.msra.mxu0 %v452
    %502 = vmatprep.subr.mxu0 %v455
    %503 = vmatpush1.msra.mxu0 %v454
    %504 = vmatprep.subr.mxu0 0.0
    %505 = vmatpush1.msra.mxu0 0.0
    %506 = vmatprep.subr.mxu0 0.0
    %507 = vmatpush1.msra.mxu0 0.0
    %508 = vmatprep.subr.mxu0 0.0
    %509 = vmatpush1.msra.mxu0 0.0
    %510 = vmatprep.subr.mxu0 0.0
    %511 = vmatpush1.msra.mxu0 0.0
    %512 = vmatprep.subr.mxu0 0.0
    %513 = vmatpush1.msra.mxu0 0.0
    %514 = vmatprep.subr.mxu0 0.0
    %515 = vmatpush1.msra.mxu0 0.0
    %516 = vmatprep.subr.mxu0 0.0
    %517 = vmatpush1.msra.mxu0 0.0
    %518 = vmatprep.subr.mxu0 0.0
    %519 = vmatpush1.msra.mxu0 0.0
    %520 = vmatprep.subr.mxu0 0.0
    %521 = vmatpush1.msra.mxu0 0.0
    %522 = vmatprep.subr.mxu0 0.0
    %523 = vmatpush1.msra.mxu0 0.0
    %524 = vmatprep.subr.mxu0 0.0
    %525 = vmatpush1.msra.mxu0 0.0
    %526 = vmatprep.subr.mxu0 0.0
    %527 = vmatpush1.msra.mxu0 0.0
    %528 = vmatprep.subr.mxu0 0.0
    %529 = vmatpush1.msra.mxu0 0.0
    %530 = vmatprep.subr.mxu0 0.0
    %531 = vmatpush1.msra.mxu0 0.0
    %532 = vmatprep.subr.mxu0 0.0
    %533 = vmatpush1.msra.mxu0 0.0
    %534 = vmatprep.subr.mxu0 0.0
    %535 = vmatpush1.msra.mxu0 0.0
    %536 = vmatprep.subr.mxu0 0.0
    %537 = vmatpush1.msra.mxu0 0.0
    %538 = vmatprep.subr.mxu0 0.0
    %539 = vmatpush1.msra.mxu0 0.0
    %540 = vmatprep.subr.mxu0 0.0
    %541 = vmatpush1.msra.mxu0 0.0
    %542 = vmatprep.subr.mxu0 0.0
    %543 = vmatpush1.msra.mxu0 0.0
    %544 = vmatprep.subr.mxu0 0.0
    %545 = vmatpush1.msra.mxu0 0.0
    %546 = vmatprep.subr.mxu0 0.0
    %547 = vmatpush1.msra.mxu0 0.0
    %548 = vmatprep.subr.mxu0 0.0
    %549 = vmatpush1.msra.mxu0 0.0
    %550 = vmatprep.subr.mxu0 0.0
    %551 = vmatpush1.msra.mxu0 0.0
    %552 = vmatprep.subr.mxu0 0.0
    %553 = vmatpush1.msra.mxu0 0.0
    %554 = vmatprep.subr.mxu0 0.0
    %555 = vmatpush1.msra.mxu0 0.0
    %556 = vmatprep.subr.mxu0 0.0
    %557 = vmatpush1.msra.mxu0 0.0
    %558 = vmatprep.subr.mxu0 0.0
    %559 = vmatpush1.msra.mxu0 0.0
    %560 = vmatprep.mubr.f32.mxu0 0.0
    %561 = vmatmul.mubr.f32.gmra.mrb[0].mxu0 %v485
    %v562 = vpop.f32.mrb[0].mxu0
    %v563 = vadd.f32 %v467, %v562
    %v564 = vpop.f32.mrb[0].mxu0
    %v565 = vadd.f32 %v467, %v564
    %566 = vmatprep.mubr.f32.mxu0 0.0
    %567 = vmatmul.mubr.f32.gmra.mrb[0].mxu0 %v488
    %v568 = vpop.f32.mrb[0].mxu0
    %v569 = vadd.f32 %v472, %v568
    %v570 = vpop.f32.mrb[0].mxu0
    %v571 = vadd.f32 %v472, %v570
    %572 = vmatprep.mubr.f32.mxu0 0.0
    %573 = vmatmul.mubr.f32.gmra.mrb[0].mxu0 %v491
    %v574 = vpop.f32.mrb[0].mxu0
    %v575 = vadd.f32 %v477, %v574
    %v576 = vpop.f32.mrb[0].mxu0
    %v577 = vadd.f32 %v477, %v576
    %578 = vmatprep.mubr.f32.mxu0 0.0
    %579 = vmatmul.mubr.f32.gmra.mrb[0].mxu0 %v494
    %v580 = vpop.f32.mrb[0].mxu0
    %v581 = vadd.f32 %v482, %v580
    %v582 = vpop.f32.mrb[0].mxu0
    %v583 = vadd.f32 %v482, %v582
    %584 = vdwg.mxu0
    %v585 = vtanh.pop %v563
    %v586 = vtanh.pop %v565
    %v587 = vtanh.pop %v569
    %v588 = vtanh.pop %v571
    %v589 = vtanh.pop %v575
    %v590 = vtanh.pop %v577
    %v591 = vtanh.pop %v581
    %v592 = vtanh.pop %v583
    %v593 = vld [vmem:[%s9] sm:$0x3]
    %v594 = vld [vmem:[%s10] sm:$0x3]
    %596 = vset.pattern.permute.xlu0 0
    %597 = vperm.xlu0 %596, %v594
    %v598 = vpop.permute.xlu0 %597
    %v601 = vsel %vm209, %v593, 0
    %603 = vmatprep.subr.mxu0 %v586
    %604 = vmatpush1.msra.mxu0 %v585
    %605 = vmatprep.subr.mxu0 %v588
    %606 = vmatpush1.msra.mxu0 %v587
    %607 = vmatprep.subr.mxu0 %v590
    %608 = vmatpush1.msra.mxu0 %v589
    %609 = vmatprep.subr.mxu0 %v592
    %610 = vmatpush1.msra.mxu0 %v591
    %611 = vmatprep.subr.mxu0 0.0
    %612 = vmatpush1.msra.mxu0 0.0
    %613 = vmatprep.subr.mxu0 0.0
    %614 = vmatpush1.msra.mxu0 0.0
    %615 = vmatprep.subr.mxu0 0.0
    %616 = vmatpush1.msra.mxu0 0.0
    %617 = vmatprep.subr.mxu0 0.0
    %618 = vmatpush1.msra.mxu0 0.0
    %619 = vmatprep.subr.mxu0 0.0
    %620 = vmatpush1.msra.mxu0 0.0
    %621 = vmatprep.subr.mxu0 0.0
    %622 = vmatpush1.msra.mxu0 0.0
    %623 = vmatprep.subr.mxu0 0.0
    %624 = vmatpush1.msra.mxu0 0.0
    %625 = vmatprep.subr.mxu0 0.0
    %626 = vmatpush1.msra.mxu0 0.0
    %627 = vmatprep.subr.mxu0 0.0
    %628 = vmatpush1.msra.mxu0 0.0
    %629 = vmatprep.subr.mxu0 0.0
    %630 = vmatpush1.msra.mxu0 0.0
    %631 = vmatprep.subr.mxu0 0.0
    %632 = vmatpush1.msra.mxu0 0.0
    %633 = vmatprep.subr.mxu0 0.0
    %634 = vmatpush1.msra.mxu0 0.0
    %635 = vmatprep.subr.mxu0 0.0
    %636 = vmatpush1.msra.mxu0 0.0
    %637 = vmatprep.subr.mxu0 0.0
    %638 = vmatpush1.msra.mxu0 0.0
    %639 = vmatprep.subr.mxu0 0.0
    %640 = vmatpush1.msra.mxu0 0.0
    %641 = vmatprep.subr.mxu0 0.0
    %642 = vmatpush1.msra.mxu0 0.0
    %643 = vmatprep.subr.mxu0 0.0
    %644 = vmatpush1.msra.mxu0 0.0
    %645 = vmatprep.subr.mxu0 0.0
    %646 = vmatpush1.msra.mxu0 0.0
    %647 = vmatprep.subr.mxu0 0.0
    %648 = vmatpush1.msra.mxu0 0.0
    %649 = vmatprep.subr.mxu0 0.0
    %650 = vmatpush1.msra.mxu0 0.0
    %651 = vmatprep.subr.mxu0 0.0
    %652 = vmatpush1.msra.mxu0 0.0
    %653 = vmatprep.subr.mxu0 0.0
    %654 = vmatpush1.msra.mxu0 0.0
    %655 = vmatprep.subr.mxu0 0.0
    %656 = vmatpush1.msra.mxu0 0.0
    %657 = vmatprep.subr.mxu0 0.0
    %658 = vmatpush1.msra.mxu0 0.0
    %659 = vmatprep.subr.mxu0 0.0
    %660 = vmatpush1.msra.mxu0 0.0
    %661 = vmatprep.subr.mxu0 0.0
    %662 = vmatpush1.msra.mxu0 0.0
    %663 = vmatprep.subr.mxu0 0.0
    %664 = vmatpush1.msra.mxu0 0.0
    %665 = vmatprep.subr.mxu0 0.0
    %666 = vmatpush1.msra.mxu0 0.0
    %667 = vmatprep.mubr.f32.mxu0 0.0
    %668 = vmatmul.mubr.f32.gmra.mrb[0].mxu0 %v601
    %v669 = vpop.f32.mrb[0].mxu0
    %v670 = vadd.f32 %v598, %v669
    %v671 = vpop.f32.mrb[0].mxu0
    %v672 = vadd.f32 %v598, %v671
    %673 = vdwg.mxu0
    %v674 = vand.u32 2147483647, %v670
    %vm675 = vcmp.le.f32.partialorder %v674, 0.7853982
    %vm676 = vcmp.lt.s32.totalorder %v670, 0
    %v677 = vand.u32 %v670, 2139095040
    %v678 = vshrl.u32 %v677, 23
    %v679 = vsub.s32 %v678, 127
    %v680 = vand.u32 2147483647, %v670
    %v681 = vand.u32 %v680, 8388607
    %v682 = vor.u32 %v681, 8388608
    %v683 = vsub.s32 0, %v682
    %v684 = vadd.s32 %v679, 1
    %vm685 = vcmp.gt.s32.totalorder %v684, 0
    %v686 = vsel %vm685, %v684, 0
    %v687 = vshrl.u32 %v686, 5
    %v688 = vand.u32 %v686, 31
    %v689 = vsub.s32 32, %v688
    %v690 = vshrl.u32 683565275, %v689
    %v691 = vshll.u32 683565275, %v688
    %v692 = vshrl.u32 2475754826, %v689
    %v693 = vor.u32 %v691, %v692
    %v694 = vshll.u32 2475754826, %v688
    %v695 = vshrl.u32 2131351028, %v689
    %v696 = vor.u32 %v694, %v695
    %v697 = vshll.u32 2131351028, %v688
    %v698 = vshrl.u32 2102212464, %v689
    %v699 = vor.u32 %v697, %v698
    %v700 = vshll.u32 2102212464, %v688
    %v701 = vshrl.u32 920167782, %v689
    %v702 = vor.u32 %v700, %v701
    %v703 = vshll.u32 920167782, %v688
    %v704 = vshrl.u32 1326507024, %v689
    %v705 = vor.u32 %v703, %v704
    %vm706 = vcmp.lt.s32.totalorder %v687, 1
    %vm707 = vcmp.lt.s32.totalorder %v687, 2
    %vm708 = vcmp.lt.s32.totalorder %v687, 3
    %vm709 = vcmp.lt.s32.totalorder %v687, 4
    %v710 = vsel %vm706, %v690, %v693
    %v711 = vsel %vm709, %v699, 2102212464
    %v712 = vsel %vm708, %v696, %v711
    %v713 = vsel %vm707, %v710, %v712
    %v714 = vsel %vm706, %v693, %v696
    %v715 = vsel %vm709, %v702, 920167782
    %v716 = vsel %vm708, %v699, %v715
    %v717 = vsel %vm707, %v714, %v716
    %v718 = vsel %vm706, %v696, %v699
    %v719 = vsel %vm709, %v705, 1326507024
    %v720 = vsel %vm708, %v702, %v719
    %v721 = vsel %vm707, %v718, %v720
    %v722 = vshll.u32 %v682, 8
    %v723 = vmul.u32.u64.compose %v722, %v721
    %v724 = vextract.low.u32 %v723
    %v725 = vextract.high.u32 %v723
    %v726 = vmul.u32.u64.compose %v722, %v717
    %v727 = vextract.low.u32 %v726
    %v728 = vextract.high.u32 %v726
    %v729 = vmul.u32 %v722, %v713
    %v730 = vadd.s32 %v725, %v727
    %vm731 = vc.u32 %v725, %v727
    %v732 = vadd.s32 %v728, 1
    %v733 = vsel %vm731, %v732, %v728
    %v734 = vadd.s32 %v729, %v733
    %v735 = vadd.s32 %v734, 536870912
    %v736 = vshrl.u32 %v735, 30
    %v737 = vshll.u32 %v736, 30
    %v738 = vsub.s32 %v734, %v737
    %vm739 = vcmp.lt.s32.totalorder %v738, 0
    %v740 = vsub.s32 0, %v738
    %v741 = vsel %vm739, %v740, %v738
    %v742 = vclz %v741
    %v743 = vsub.s32 %v742, 2
    %vm744 = vcmp.gt.s32.totalorder 0, %v743
    %v745 = vsel %vm744, 0, %v743
    %v746 = vsub.s32 32, %v745
    %v747 = vshll.u32 %v738, %v745
    %v748 = vshrl.u32 %v730, %v746
    %v749 = vor.u32 %v747, %v748
    %v750 = vsub.s32 4294967266, %v745
    %v751 = vadd.s32 %v750, 127
    %v752 = vshll.u32 %v751, 23
    %v753 = vor.u32 4788187, %v752
    %v754 = vand.u32 2147483647, %v753
    %v756 = vcvt.s32.f32 %v749
    %v757 = vmul.f32 %v756, %v754
    %v758 = vxor.u32 %v757, 2147483648
    %v759 = vsel %vm676, %v758, %v757
    %v760 = vsub.s32 4, %v736
    %v761 = vsel %vm676, %v760, %v736
    %v762 = vsel %vm675, %v670, %v759
    %v763 = vsel %vm675, 0, %v761
    %v764 = vcosq.f32.pop %v762
    %v765 = vsinq.f32.pop %v762
    %vm766 = vweird.f32 %v670
    %v767 = vadd.s32 %v763, 3
    %v768 = vand.u32 %v767, 3
    %vm769 = vcmp.lt.s32.totalorder %v768, 2
    %vm770 = vcmp.eq.s32.totalorder %v768, 0
    %v771 = vxor.u32 %v765, 2147483648
    %v772 = vsel %vm770, %v764, %v771
    %vm773 = vcmp.eq.s32.totalorder %v768, 2
    %v774 = vxor.u32 %v764, 2147483648
    %v775 = vsel %vm773, %v774, %v765
    %v776 = vsel %vm769, %v772, %v775
    %v777 = vsel %vm766, nan, %v776
    %v778 = vand.u32 2147483647, %v672
    %vm779 = vcmp.le.f32.partialorder %v778, 0.7853982
    %vm780 = vcmp.lt.s32.totalorder %v672, 0
    %v781 = vand.u32 %v672, 2139095040
    %v782 = vshrl.u32 %v781, 23
    %v783 = vsub.s32 %v782, 127
    %v784 = vand.u32 2147483647, %v672
    %v785 = vand.u32 %v784, 8388607
    %v786 = vor.u32 %v785, 8388608
    %v787 = vsub.s32 0, %v786
    %v788 = vadd.s32 %v783, 1
    %vm789 = vcmp.gt.s32.totalorder %v788, 0
    %v790 = vsel %vm789, %v788, 0
    %v791 = vshrl.u32 %v790, 5
    %v792 = vand.u32 %v790, 31
    %v793 = vsub.s32 32, %v792
    %v794 = vshrl.u32 683565275, %v793
    %v795 = vshll.u32 683565275, %v792
    %v796 = vshrl.u32 2475754826, %v793
    %v797 = vor.u32 %v795, %v796
    %v798 = vshll.u32 2475754826, %v792
    %v799 = vshrl.u32 2131351028, %v793
    %v800 = vor.u32 %v798, %v799
    %v801 = vshll.u32 2131351028, %v792
    %v802 = vshrl.u32 2102212464, %v793
    %v803 = vor.u32 %v801, %v802
    %v804 = vshll.u32 2102212464, %v792
    %v805 = vshrl.u32 920167782, %v793
    %v806 = vor.u32 %v804, %v805
    %v807 = vshll.u32 920167782, %v792
    %v808 = vshrl.u32 1326507024, %v793
    %v809 = vor.u32 %v807, %v808
    %vm810 = vcmp.lt.s32.totalorder %v791, 1
    %vm811 = vcmp.lt.s32.totalorder %v791, 2
    %vm812 = vcmp.lt.s32.totalorder %v791, 3
    %vm813 = vcmp.lt.s32.totalorder %v791, 4
    %v814 = vsel %vm810, %v794, %v797
    %v815 = vsel %vm813, %v803, 2102212464
    %v816 = vsel %vm812, %v800, %v815
    %v817 = vsel %vm811, %v814, %v816
    %v818 = vsel %vm810, %v797, %v800
    %v819 = vsel %vm813, %v806, 920167782
    %v820 = vsel %vm812, %v803, %v819
    %v821 = vsel %vm811, %v818, %v820
    %v822 = vsel %vm810, %v800, %v803
    %v823 = vsel %vm813, %v809, 1326507024
    %v824 = vsel %vm812, %v806, %v823
    %v825 = vsel %vm811, %v822, %v824
    %v826 = vshll.u32 %v786, 8
    %v827 = vmul.u32.u64.compose %v826, %v825
    %v828 = vextract.low.u32 %v827
    %v829 = vextract.high.u32 %v827
    %v830 = vmul.u32.u64.compose %v826, %v821
    %v831 = vextract.low.u32 %v830
    %v832 = vextract.high.u32 %v830
    %v833 = vmul.u32 %v826, %v817
    %v834 = vadd.s32 %v829, %v831
    %vm835 = vc.u32 %v829, %v831
    %v836 = vadd.s32 %v832, 1
    %v837 = vsel %vm835, %v836, %v832
    %v838 = vadd.s32 %v833, %v837
    %v839 = vadd.s32 %v838, 536870912
    %v840 = vshrl.u32 %v839, 30
    %v841 = vshll.u32 %v840, 30
    %v842 = vsub.s32 %v838, %v841
    %vm843 = vcmp.lt.s32.totalorder %v842, 0
    %v844 = vsub.s32 0, %v842
    %v845 = vsel %vm843, %v844, %v842
    %v846 = vclz %v845
    %v847 = vsub.s32 %v846, 2
    %vm848 = vcmp.gt.s32.totalorder 0, %v847
    %v849 = vsel %vm848, 0, %v847
    %v850 = vsub.s32 32, %v849
    %v851 = vshll.u32 %v842, %v849
    %v852 = vshrl.u32 %v834, %v850
    %v853 = vor.u32 %v851, %v852
    %v854 = vsub.s32 4294967266, %v849
    %v855 = vadd.s32 %v854, 127
    %v856 = vshll.u32 %v855, 23
    %v857 = vor.u32 4788187, %v856
    %v858 = vand.u32 2147483647, %v857
    %v860 = vcvt.s32.f32 %v853
    %v861 = vmul.f32 %v860, %v858
    %v862 = vxor.u32 %v861, 2147483648
    %v863 = vsel %vm780, %v862, %v861
    %v864 = vsub.s32 4, %v840
    %v865 = vsel %vm780, %v864, %v840
    %v866 = vsel %vm779, %v672, %v863
    %v867 = vsel %vm779, 0, %v865
    %v868 = vcosq.f32.pop %v866
    %v869 = vsinq.f32.pop %v866
    %vm870 = vweird.f32 %v672
    %v871 = vadd.s32 %v867, 3
    %v872 = vand.u32 %v871, 3
    %vm873 = vcmp.lt.s32.totalorder %v872, 2
    %vm874 = vcmp.eq.s32.totalorder %v872, 0
    %v875 = vxor.u32 %v869, 2147483648
    %v876 = vsel %vm874, %v868, %v875
    %vm877 = vcmp.eq.s32.totalorder %v872, 2
    %v878 = vxor.u32 %v868, 2147483648
    %v879 = vsel %vm877, %v878, %v869
    %v880 = vsel %vm873, %v876, %v879
    %v881 = vsel %vm870, nan, %v880
    %v882 = vmul.f32 %v777, 0.9
    %v883 = vmul.f32 %v881, 0.9
    %v884 = vsub.f32 1.0, %v882
    %v885 = vsub.f32 1.0, %v883
    %v888 = vcombine.low %v670, %v672
    %v890 = vunpack.c.l.s4 1966171168
    %v891 = vunpack.c.0.s8 %v890
    %v892 = vlaneseq
    %v893 = vshrl.u32 %v892, 7
    %v894 = vsub.s32 %v891, %v893
    %v895 = vrot.slane %v888, %v894
    %v897 = vunpack.c.l.s4 1966171168
    %v898 = vunpack.c.0.s8 %v897
    %v899 = vlaneseq
    %v900 = vshrl.u32 %v899, 7
    %v901 = vsub.s32 %v898, %v900
    %v902 = vrot.slane %v895, %v901
    %v904 = vlaneseq
    %vm905 = vcmp.ge.s32.totalorder %v904, 0
    %vm906 = vcmp.lt.s32.totalorder %v904, 256
    %vm907 = vmand %vm905, %vm906
    %908 = vst.msk [vmem:[#allocation2] ss:$2 sm:$0x3] %vm907, %v902
    %v911 = vcombine.low %v884, %v885
    %v913 = vunpack.c.l.s4 1966171168
    %v914 = vunpack.c.0.s8 %v913
    %v915 = vlaneseq
    %v916 = vshrl.u32 %v915, 7
    %v917 = vsub.s32 %v914, %v916
    %v918 = vrot.slane %v911, %v917
    %v919 = vcombine.high %v918, %v918
    %v921 = vunpack.c.l.s4 1966171168
    %v922 = vunpack.c.0.s8 %v921
    %v923 = vlaneseq
    %v924 = vshrl.u32 %v923, 7
    %v925 = vsub.s32 %v922, %v924
    %v926 = vrot.slane %v919, %v925
    %s928 = scalar_lea.vmem [#allocation2], 1
    %929 = vst.msk [vmem:[%s928] ss:$2 sm:$0x3] %vm907, %v926
    // Predicated region
    $region46: #{tpu_custom_call.1} parent=1 // pred_check
      _
    $region47: #{tpu_custom_call.1} parent=1 // pred_check_branch
      %931 = sbr.rel (0) target = $region49
    $region48: #{tpu_custom_call.1} parent=1 // pred_region
      %s933 = ssub.s32 64, 64
      %934 = vsyncadd [#allocation3], %s933
      %s936 = sshll.u32 [#allocation2], 4
      %s937 = int_to_ptr.vmem [resolvable:$true] %s936
      %939 = dma.vmem_to_hbm [thread:$0]  %s937, 64, %s11, [#allocation3]
    $region49: #{tpu_custom_call.1} parent=1 // pred_fallthru
      _
    // Predicated region
    $region50: #{tpu_custom_call.1} parent=1 // pred_check
      _
    $region51: #{tpu_custom_call.1} parent=1 // pred_check_branch
      %941 = sbr.rel (0) target = $region53
    $region52: #{tpu_custom_call.1} parent=1 // pred_region
      %942 = dma.done [#allocation3], 64
    $region53: #{tpu_custom_call.1} parent=1 // pred_fallthru
      _
    %943 = vsyncpa [#allocation3], 1

</llo_original>
